<compile_context>
chip_gen: v6e
topology: v6e:2x2x1
jax: 0.10.0
libtpu: 0.0.40
codegen_flags: <defaults>
</compile_context>

<pallas_src>
import math

import jax
import jax.numpy as jnp
from jax import lax
from jax.experimental import pallas as pl
from jax.experimental.pallas import tpu as pltpu


_SQRT_2_OVER_PI = math.sqrt(2.0 / math.pi)

# Kernel parameter order.  Weights are PyTorch-native (out_features,
# in_features); biases / hash vectors are stored as (features, 1) so they
# broadcast along the lane (row) dimension of the transposed activations.
PARAM_NAMES = ("w1", "b1", "h1", "w2", "b2", "h2", "w3", "b3", "h3", "w4", "b4")


def _gelu(x):
    # tanh-approximate GELU (a few VPU ops + 1 EUP tanh per element;
    # guaranteed Mosaic lowering).
    # TODO(synk): PyTorch F.gelu defaults to the exact erf form; erf has no
    # guaranteed Pallas-TPU lowering, so kernel + reference both use the tanh
    # approximation (max abs deviation from the erf form ~3e-3).
    return 0.5 * x * (1.0 + jnp.tanh(_SQRT_2_OVER_PI * (x + 0.044715 * x * x * x)))


# ----------------------------- kernel ---------------------------------------


def newmlp_kernel(x_ref,
                  w1_ref, b1_ref, h1_ref,
                  w2_ref, b2_ref, h2_ref,
                  w3_ref, b3_ref, h3_ref,
                  w4_ref, b4_ref,
                  o_ref):
    """Fused forward: 3 x (Linear -> GELU -> +hash) -> Linear -> clamp.

    x_ref : (tm, d_in)  -- rows on sublanes (only the input DMA tile is
                            lane-sparse; it is consumed directly by the MXU).
    Activations are kept as (features, tm): rows on LANES, so all elementwise
    work runs on dense vregs and the (d_out, tm) output store is lane-dense.
    """
    # Layer 1: contract w1 (h, d_in) dim 1 with x (tm, d_in) dim 1 -> (h, tm).
    # The MXU consumes the transposed RHS directly (same contraction pattern
    # as the attention q @ k^T einsum), so no explicit transpose of x.
    a = lax.dot_general(
        w1_ref[...], x_ref[...],
        dimension_numbers=(((1,), (1,)), ((), ())),
        preferred_element_type=jnp.float32)
    a = _gelu(a + b1_ref[...]) + h1_ref[...]

    a = jnp.dot(w2_ref[...], a, preferred_element_type=jnp.float32)
    a = _gelu(a + b2_ref[...]) + h2_ref[...]

    a = jnp.dot(w3_ref[...], a, preferred_element_type=jnp.float32)
    a = _gelu(a + b3_ref[...]) + h3_ref[...]

    out = jnp.dot(w4_ref[...], a, preferred_element_type=jnp.float32)
    out = out + b4_ref[...]
    o_ref[...] = jnp.clip(out, -1.0, 1.0).astype(o_ref.dtype)


# ----------------------------- wrapper ---------------------------------------


def newmlp_forward(params, x, *, tm=2048, small_n=1024):
    """Fused newMLP forward.  x: (n, input_size) -> (n, output_size) f32."""
    n, d_in = x.shape
    d_out = params["w4"].shape[0]
    param_args = tuple(params[k] for k in PARAM_NAMES)

    if n <= small_n:
        # Single fused, grid-free invocation: everything stays VMEM-resident,
        # no pipeline-step overhead, no double-buffering of the constants.
        out_t = pl.pallas_call(
            newmlp_kernel,
            out_shape=jax.ShapeDtypeStruct((d_out, n), jnp.float32),
            in_specs=[pl.BlockSpec(memory_space=pltpu.MemorySpace.VMEM)]
                     * (1 + len(param_args)),
            out_specs=pl.BlockSpec(memory_space=pltpu.MemorySpace.VMEM),
        )(x, *param_args)
        return out_t.T

    # Tiled grid over rows.  Guarantee >= 2 grid steps so both v7x
    # TensorCores get work (no-op on v5e/v6e); keep the per-step row tile a
    # multiple of 128 so the (d_out, tm) output store stays lane-dense.
    # Ragged N is handled by Pallas' partial-final-block masking: no
    # wrapper-side pad / slice HBM round-trips.
    tm_eff = min(tm, 128 * pl.cdiv(pl.cdiv(n, 2), 128))
    grid = (pl.cdiv(n, tm_eff),)

    in_specs = [pl.BlockSpec((tm_eff, d_in), lambda i: (i, 0))]
    # Constant-index blocks: params stay VMEM-resident across grid steps
    # (Pallas skips the re-fetch when the block index does not change).
    in_specs += [pl.BlockSpec(p.shape, lambda i: (0, 0)) for p in param_args]

    out_t = pl.pallas_call(
        newmlp_kernel,
        out_shape=jax.ShapeDtypeStruct((d_out, n), jnp.float32),
        grid=grid,
        in_specs=in_specs,
        out_specs=pl.BlockSpec((d_out, tm_eff), lambda i: (0, i)),
        compiler_params=pltpu.CompilerParams(
            dimension_semantics=("parallel",)),
    )(x, *param_args)
    # Tiny (d_out, n) -> (n, d_out) presentation transpose outside the kernel.
    return out_t.T


# ------------------------- parameter initialisation --------------------------


def init_params(key, input_size, hidden_size, output_size):
    ks = jax.random.split(key, 11)
    dims = [(input_size, hidden_size), (hidden_size, hidden_size),
            (hidden_size, hidden_size), (hidden_size, output_size)]
    params = {}
    for i, (fan_in, fan_out) in enumerate(dims, start=1):
        bound = 1.0 / math.sqrt(fan_in)          # nn.Linear default init range
        params[f"w{i}"] = jax.random.uniform(     # PyTorch layout: (out, in)
            ks[2 * i - 2], (fan_out, fan_in), jnp.float32, -bound, bound)
        params[f"b{i}"] = jax.random.uniform(     # stored as (out, 1)
            ks[2 * i - 1], (fan_out, 1), jnp.float32, -bound, bound)
    for j, name in enumerate(("h1", "h2", "h3")):
        # 0.0001 * (rand(hidden) * 2 - 1), stored as (hidden, 1)
        params[name] = 1e-4 * (
            jax.random.uniform(ks[8 + j], (hidden_size, 1), jnp.float32) * 2.0 - 1.0)
    return params


# ------------------------------ reference ------------------------------------


def newmlp_reference(params, x):
    a = x.astype(jnp.float32)
    hp = jax.lax.Precision.HIGHEST
    for i in (1, 2, 3):
        a = _gelu(jnp.dot(a, params[f"w{i}"].T, precision=hp)
                  + params[f"b{i}"][:, 0]) + params[f"h{i}"][:, 0]
    a = jnp.dot(a, params["w4"].T, precision=hp) + params["b4"][:, 0]
    return jnp.clip(a, -1.0, 1.0)


# --------------------------------- main --------------------------------------


if __name__ == "__main__":
    input_size, hidden_size, output_size = 16, 32, 4
    key = jax.random.PRNGKey(0)
    pkey, xkey = jax.random.split(key)
    params = init_params(pkey, input_size, hidden_size, output_size)

    # Path 1: small-N fast path — single fused, grid-free invocation.
    n = 256
    x = jax.random.uniform(xkey, (n, input_size), jnp.float32)
    out = jax.block_until_ready(newmlp_forward(params, x))
    ref = newmlp_reference(params, x)
    assert out.shape == (n, output_size)
    assert bool(jnp.all(out <= 1.0)) and bool(jnp.all(out >= -1.0))
    assert bool(jnp.allclose(out, ref, rtol=2e-3, atol=2e-3)), "fast path mismatch"

    # Path 2: tiled grid path with >= 2 steps (feeds both v7x TCs) and a
    # ragged final block (exercises partial-block masking, no pad/slice).
    n_big = 3000
    x_big = jax.random.uniform(jax.random.PRNGKey(1), (n_big, input_size),
                               jnp.float32)
    out_big = jax.block_until_ready(newmlp_forward(params, x_big))
    ref_big = newmlp_reference(params, x_big)
    assert out_big.shape == (n_big, output_size)
    assert bool(jnp.all(out_big <= 1.0)) and bool(jnp.all(out_big >= -1.0))
    assert bool(jnp.allclose(out_big, ref_big, rtol=2e-3, atol=2e-3)), \
        "grid path mismatch"

    print("KERNEL_OK")
</pallas_src>

<mosaic_0001>
module attributes {stable_mosaic.version = 11 : i64} {
  func.func @newmlp_kernel(%arg0: memref<256x16xf32, #tpu.memory_space<vmem>>, %arg1: memref<32x16xf32, #tpu.memory_space<vmem>>, %arg2: memref<32x1xf32, #tpu.memory_space<vmem>>, %arg3: memref<32x1xf32, #tpu.memory_space<vmem>>, %arg4: memref<32x32xf32, #tpu.memory_space<vmem>>, %arg5: memref<32x1xf32, #tpu.memory_space<vmem>>, %arg6: memref<32x1xf32, #tpu.memory_space<vmem>>, %arg7: memref<32x32xf32, #tpu.memory_space<vmem>>, %arg8: memref<32x1xf32, #tpu.memory_space<vmem>>, %arg9: memref<32x1xf32, #tpu.memory_space<vmem>>, %arg10: memref<4x32xf32, #tpu.memory_space<vmem>>, %arg11: memref<4x1xf32, #tpu.memory_space<vmem>>, %arg12: memref<4x256xf32, #tpu.memory_space<vmem>>) attributes {dimension_semantics = [], scalar_prefetch = 0 : i64, scratch_operands = 0 : i64, tpu.core_type = #tpu.core_type<tc>} {
    %c0 = arith.constant 0 : index
    %c0_0 = arith.constant 0 : index
    %0 = vector.load %arg1[%c0, %c0_0] : memref<32x16xf32, #tpu.memory_space<vmem>>, vector<32x16xf32>
    %c0_1 = arith.constant 0 : index
    %c0_2 = arith.constant 0 : index
    %1 = vector.load %arg0[%c0_1, %c0_2] : memref<256x16xf32, #tpu.memory_space<vmem>>, vector<256x16xf32>
    %cst = arith.constant dense<0.000000e+00> : vector<32x256xf32>
    %2 = tpu.matmul %0, %1, %cst {dimension_numbers = #tpu.dot_dimension_numbers<[1], [1], [0], [0], [0, 0, 1, 0], [], []>} : vector<32x16xf32>, vector<256x16xf32>, vector<32x256xf32> -> vector<32x256xf32>
    %c0_3 = arith.constant 0 : index
    %c0_4 = arith.constant 0 : index
    %3 = vector.load %arg2[%c0_3, %c0_4] : memref<32x1xf32, #tpu.memory_space<vmem>>, vector<32x1xf32>
    %4 = vector.broadcast %3 : vector<32x1xf32> to vector<32x256xf32>
    %5 = arith.addf %2, %4 : vector<32x256xf32>
    %cst_5 = arith.constant 5.000000e-01 : f32
    %6 = vector.broadcast %cst_5 : f32 to vector<32x256xf32>
    %7 = arith.mulf %6, %5 : vector<32x256xf32>
    %cst_6 = arith.constant 4.471500e-02 : f32
    %8 = vector.broadcast %cst_6 : f32 to vector<32x256xf32>
    %9 = arith.mulf %8, %5 : vector<32x256xf32>
    %10 = arith.mulf %9, %5 : vector<32x256xf32>
    %11 = arith.mulf %10, %5 : vector<32x256xf32>
    %12 = arith.addf %5, %11 : vector<32x256xf32>
    %cst_7 = arith.constant 0.797884583 : f32
    %13 = vector.broadcast %cst_7 : f32 to vector<32x256xf32>
    %14 = arith.mulf %13, %12 : vector<32x256xf32>
    %15 = math.tanh %14 : vector<32x256xf32>
    %cst_8 = arith.constant 1.000000e+00 : f32
    %16 = vector.broadcast %cst_8 : f32 to vector<32x256xf32>
    %17 = arith.addf %16, %15 : vector<32x256xf32>
    %18 = arith.mulf %7, %17 : vector<32x256xf32>
    %c0_9 = arith.constant 0 : index
    %c0_10 = arith.constant 0 : index
    %19 = vector.load %arg3[%c0_9, %c0_10] : memref<32x1xf32, #tpu.memory_space<vmem>>, vector<32x1xf32>
    %20 = vector.broadcast %19 : vector<32x1xf32> to vector<32x256xf32>
    %21 = arith.addf %18, %20 : vector<32x256xf32>
    %c0_11 = arith.constant 0 : index
    %c0_12 = arith.constant 0 : index
    %22 = vector.load %arg4[%c0_11, %c0_12] : memref<32x32xf32, #tpu.memory_space<vmem>>, vector<32x32xf32>
    %cst_13 = arith.constant dense<0.000000e+00> : vector<32x256xf32>
    %23 = tpu.matmul %22, %21, %cst_13 {dimension_numbers = #tpu.dot_dimension_numbers<[1], [0], [0], [1], [0, 0, 1, 1], [], []>} : vector<32x32xf32>, vector<32x256xf32>, vector<32x256xf32> -> vector<32x256xf32>
    %c0_14 = arith.constant 0 : index
    %c0_15 = arith.constant 0 : index
    %24 = vector.load %arg5[%c0_14, %c0_15] : memref<32x1xf32, #tpu.memory_space<vmem>>, vector<32x1xf32>
    %25 = vector.broadcast %24 : vector<32x1xf32> to vector<32x256xf32>
    %26 = arith.addf %23, %25 : vector<32x256xf32>
    %cst_16 = arith.constant 5.000000e-01 : f32
    %27 = vector.broadcast %cst_16 : f32 to vector<32x256xf32>
    %28 = arith.mulf %27, %26 : vector<32x256xf32>
    %cst_17 = arith.constant 4.471500e-02 : f32
    %29 = vector.broadcast %cst_17 : f32 to vector<32x256xf32>
    %30 = arith.mulf %29, %26 : vector<32x256xf32>
    %31 = arith.mulf %30, %26 : vector<32x256xf32>
    %32 = arith.mulf %31, %26 : vector<32x256xf32>
    %33 = arith.addf %26, %32 : vector<32x256xf32>
    %cst_18 = arith.constant 0.797884583 : f32
    %34 = vector.broadcast %cst_18 : f32 to vector<32x256xf32>
    %35 = arith.mulf %34, %33 : vector<32x256xf32>
    %36 = math.tanh %35 : vector<32x256xf32>
    %cst_19 = arith.constant 1.000000e+00 : f32
    %37 = vector.broadcast %cst_19 : f32 to vector<32x256xf32>
    %38 = arith.addf %37, %36 : vector<32x256xf32>
    %39 = arith.mulf %28, %38 : vector<32x256xf32>
    %c0_20 = arith.constant 0 : index
    %c0_21 = arith.constant 0 : index
    %40 = vector.load %arg6[%c0_20, %c0_21] : memref<32x1xf32, #tpu.memory_space<vmem>>, vector<32x1xf32>
    %41 = vector.broadcast %40 : vector<32x1xf32> to vector<32x256xf32>
    %42 = arith.addf %39, %41 : vector<32x256xf32>
    %c0_22 = arith.constant 0 : index
    %c0_23 = arith.constant 0 : index
    %43 = vector.load %arg7[%c0_22, %c0_23] : memref<32x32xf32, #tpu.memory_space<vmem>>, vector<32x32xf32>
    %cst_24 = arith.constant dense<0.000000e+00> : vector<32x256xf32>
    %44 = tpu.matmul %43, %42, %cst_24 {dimension_numbers = #tpu.dot_dimension_numbers<[1], [0], [0], [1], [0, 0, 1, 1], [], []>} : vector<32x32xf32>, vector<32x256xf32>, vector<32x256xf32> -> vector<32x256xf32>
    %c0_25 = arith.constant 0 : index
    %c0_26 = arith.constant 0 : index
    %45 = vector.load %arg8[%c0_25, %c0_26] : memref<32x1xf32, #tpu.memory_space<vmem>>, vector<32x1xf32>
    %46 = vector.broadcast %45 : vector<32x1xf32> to vector<32x256xf32>
    %47 = arith.addf %44, %46 : vector<32x256xf32>
    %cst_27 = arith.constant 5.000000e-01 : f32
    %48 = vector.broadcast %cst_27 : f32 to vector<32x256xf32>
    %49 = arith.mulf %48, %47 : vector<32x256xf32>
    %cst_28 = arith.constant 4.471500e-02 : f32
    %50 = vector.broadcast %cst_28 : f32 to vector<32x256xf32>
    %51 = arith.mulf %50, %47 : vector<32x256xf32>
    %52 = arith.mulf %51, %47 : vector<32x256xf32>
    %53 = arith.mulf %52, %47 : vector<32x256xf32>
    %54 = arith.addf %47, %53 : vector<32x256xf32>
    %cst_29 = arith.constant 0.797884583 : f32
    %55 = vector.broadcast %cst_29 : f32 to vector<32x256xf32>
    %56 = arith.mulf %55, %54 : vector<32x256xf32>
    %57 = math.tanh %56 : vector<32x256xf32>
    %cst_30 = arith.constant 1.000000e+00 : f32
    %58 = vector.broadcast %cst_30 : f32 to vector<32x256xf32>
    %59 = arith.addf %58, %57 : vector<32x256xf32>
    %60 = arith.mulf %49, %59 : vector<32x256xf32>
    %c0_31 = arith.constant 0 : index
    %c0_32 = arith.constant 0 : index
    %61 = vector.load %arg9[%c0_31, %c0_32] : memref<32x1xf32, #tpu.memory_space<vmem>>, vector<32x1xf32>
    %62 = vector.broadcast %61 : vector<32x1xf32> to vector<32x256xf32>
    %63 = arith.addf %60, %62 : vector<32x256xf32>
    %c0_33 = arith.constant 0 : index
    %c0_34 = arith.constant 0 : index
    %64 = vector.load %arg10[%c0_33, %c0_34] : memref<4x32xf32, #tpu.memory_space<vmem>>, vector<4x32xf32>
    %cst_35 = arith.constant dense<0.000000e+00> : vector<4x256xf32>
    %65 = tpu.matmul %64, %63, %cst_35 {dimension_numbers = #tpu.dot_dimension_numbers<[1], [0], [0], [1], [0, 0, 1, 1], [], []>} : vector<4x32xf32>, vector<32x256xf32>, vector<4x256xf32> -> vector<4x256xf32>
    %c0_36 = arith.constant 0 : index
    %c0_37 = arith.constant 0 : index
    %66 = vector.load %arg11[%c0_36, %c0_37] : memref<4x1xf32, #tpu.memory_space<vmem>>, vector<4x1xf32>
    %67 = vector.broadcast %66 : vector<4x1xf32> to vector<4x256xf32>
    %68 = arith.addf %65, %67 : vector<4x256xf32>
    %cst_38 = arith.constant -1.000000e+00 : f32
    %cst_39 = arith.constant 1.000000e+00 : f32
    %69 = vector.broadcast %cst_38 : f32 to vector<4x256xf32>
    %70 = arith.maximumf %69, %68 : vector<4x256xf32>
    %71 = vector.broadcast %cst_39 : f32 to vector<4x256xf32>
    %72 = arith.minimumf %71, %70 : vector<4x256xf32>
    %c0_40 = arith.constant 0 : index
    %c0_41 = arith.constant 0 : index
    %73 = vector.load %arg12[%c0_40, %c0_41] : memref<4x256xf32, #tpu.memory_space<vmem>>, vector<4x256xf32>
    tpu.vector_store %arg12[%c0_40, %c0_41], %72 {strides = array<i32>} : memref<4x256xf32, #tpu.memory_space<vmem>>, vector<4x256xf32>,
    return
  }
}

</mosaic_0001>

<llo_original>
// kernel: tpu_custom_call.1
$region0: #{tpu_custom_call.1}
  #allocation0 [shape = 'u32[]', space=smem, size = 0x4, offset = 0x4, fixed_abs, tag = 'smem constant byte address 0x4 - core index']
  #allocation1 [shape = 'u32[144,128]{1,0:T(1,128)}', space=vmem, size = 0x12000, scoped, tag = 'internal scratch']
  %s0 = inlined_call_operand.vmem [shape: f32[256,16], index: 0, kind: input, shape index: {}]
  %s1 = inlined_call_operand.vmem [shape: f32[32,16], index: 1, kind: input, shape index: {}]
  %s2 = inlined_call_operand.vmem [shape: f32[32,1], index: 2, kind: input, shape index: {}]
  %s3 = inlined_call_operand.vmem [shape: f32[32,1], index: 3, kind: input, shape index: {}]
  %s4 = inlined_call_operand.vmem [shape: f32[32,32], index: 4, kind: input, shape index: {}]
  %s5 = inlined_call_operand.vmem [shape: f32[32,1], index: 5, kind: input, shape index: {}]
  %s6 = inlined_call_operand.vmem [shape: f32[32,1], index: 6, kind: input, shape index: {}]
  %s7 = inlined_call_operand.vmem [shape: f32[32,32], index: 7, kind: input, shape index: {}]
  %s8 = inlined_call_operand.vmem [shape: f32[32,1], index: 8, kind: input, shape index: {}]
  %s9 = inlined_call_operand.vmem [shape: f32[32,1], index: 9, kind: input, shape index: {}]
  %s10 = inlined_call_operand.vmem [shape: f32[4,32], index: 10, kind: input, shape index: {}]
  %s11 = inlined_call_operand.vmem [shape: f32[4,1], index: 11, kind: input, shape index: {}]
  %s12 = inlined_call_operand.hbm [shape: f32[4,256], index: 12, kind: output, shape index: {}]
  %s13 = sld [smem:[#allocation0]]
  $region58: #{tpu_custom_call.1} parent=0
    _
  %s15 = ssub.s32 1, %s13
  %s16 = scalar_select 0, %s15, %s13
  $region1: #{tpu_custom_call.1} parent=0
    #allocation2 [shape = 'u8[4096]{0}', space=vmem, size = 0x1000, scoped, tag = 'output window, operand 0, single buffered']
    #allocation3 [shape = 's32[1]{0}', space=sflag, size = 0x4, scoped, tag = 'scoped memory for tpu_custom_call.1']
    %17 = vsyncpa [#allocation3], 0
    // Predicated region
    $region2: #{tpu_custom_call.1} parent=1 // pred_check
      _
    $region3: #{tpu_custom_call.1} parent=1 // pred_check_branch
      %19 = sbr.rel (0) target = $region5
    $region4: #{tpu_custom_call.1} parent=1 // pred_region
      _
    $region5: #{tpu_custom_call.1} parent=1 // pred_fallthru
      _
    // Predicated region
    $region6: #{tpu_custom_call.1} parent=1 // pred_check
      _
    $region7: #{tpu_custom_call.1} parent=1 // pred_check_branch
      %21 = sbr.rel (0) target = $region9
    $region8: #{tpu_custom_call.1} parent=1 // pred_region
      _
    $region9: #{tpu_custom_call.1} parent=1 // pred_fallthru
      _
    // Predicated region
    $region10: #{tpu_custom_call.1} parent=1 // pred_check
      _
    $region11: #{tpu_custom_call.1} parent=1 // pred_check_branch
      %23 = sbr.rel (0) target = $region13
    $region12: #{tpu_custom_call.1} parent=1 // pred_region
      _
    $region13: #{tpu_custom_call.1} parent=1 // pred_fallthru
      _
    // Predicated region
    $region14: #{tpu_custom_call.1} parent=1 // pred_check
      _
    $region15: #{tpu_custom_call.1} parent=1 // pred_check_branch
      %25 = sbr.rel (0) target = $region17
    $region16: #{tpu_custom_call.1} parent=1 // pred_region
      _
    $region17: #{tpu_custom_call.1} parent=1 // pred_fallthru
      _
    // Predicated region
    $region18: #{tpu_custom_call.1} parent=1 // pred_check
      _
    $region19: #{tpu_custom_call.1} parent=1 // pred_check_branch
      %27 = sbr.rel (0) target = $region21
    $region20: #{tpu_custom_call.1} parent=1 // pred_region
      _
    $region21: #{tpu_custom_call.1} parent=1 // pred_fallthru
      _
    // Predicated region
    $region22: #{tpu_custom_call.1} parent=1 // pred_check
      _
    $region23: #{tpu_custom_call.1} parent=1 // pred_check_branch
      %29 = sbr.rel (0) target = $region25
    $region24: #{tpu_custom_call.1} parent=1 // pred_region
      _
    $region25: #{tpu_custom_call.1} parent=1 // pred_fallthru
      _
    // Predicated region
    $region26: #{tpu_custom_call.1} parent=1 // pred_check
      _
    $region27: #{tpu_custom_call.1} parent=1 // pred_check_branch
      %31 = sbr.rel (0) target = $region29
    $region28: #{tpu_custom_call.1} parent=1 // pred_region
      _
    $region29: #{tpu_custom_call.1} parent=1 // pred_fallthru
      _
    // Predicated region
    $region30: #{tpu_custom_call.1} parent=1 // pred_check
      _
    $region31: #{tpu_custom_call.1} parent=1 // pred_check_branch
      %33 = sbr.rel (0) target = $region33
    $region32: #{tpu_custom_call.1} parent=1 // pred_region
      _
    $region33: #{tpu_custom_call.1} parent=1 // pred_fallthru
      _
    // Predicated region
    $region34: #{tpu_custom_call.1} parent=1 // pred_check
      _
    $region35: #{tpu_custom_call.1} parent=1 // pred_check_branch
      %35 = sbr.rel (0) target = $region37
    $region36: #{tpu_custom_call.1} parent=1 // pred_region
      _
    $region37: #{tpu_custom_call.1} parent=1 // pred_fallthru
      _
    // Predicated region
    $region38: #{tpu_custom_call.1} parent=1 // pred_check
      _
    $region39: #{tpu_custom_call.1} parent=1 // pred_check_branch
      %37 = sbr.rel (0) target = $region41
    $region40: #{tpu_custom_call.1} parent=1 // pred_region
      _
    $region41: #{tpu_custom_call.1} parent=1 // pred_fallthru
      _
    // Predicated region
    $region42: #{tpu_custom_call.1} parent=1 // pred_check
      _
    $region43: #{tpu_custom_call.1} parent=1 // pred_check_branch
      %39 = sbr.rel (0) target = $region45
    $region44: #{tpu_custom_call.1} parent=1 // pred_region
      _
    $region45: #{tpu_custom_call.1} parent=1 // pred_fallthru
      _
    // Predicated region
    $region46: #{tpu_custom_call.1} parent=1 // pred_check
      _
    $region47: #{tpu_custom_call.1} parent=1 // pred_check_branch
      %41 = sbr.rel (0) target = $region49
    $region48: #{tpu_custom_call.1} parent=1 // pred_region
      _
    $region49: #{tpu_custom_call.1} parent=1 // pred_fallthru
      _
    %v42 = vld [vmem:[%s1] sm:$0xff]
    %v43 = vld [vmem:[%s1 + $0x8] sm:$0xff]
    %v44 = vld [vmem:[%s1 + $0x10] sm:$0xff]
    %v45 = vld [vmem:[%s1 + $0x18] sm:$0xff]
    %v46 = vld [vmem:[%s0] sm:$0xff]
    %v47 = vld [vmem:[%s0 + $0x8] sm:$0xff]
    %v48 = vld [vmem:[%s0 + $0x10] sm:$0xff]
    %v49 = vld [vmem:[%s0 + $0x18] sm:$0xff]
    %v50 = vld [vmem:[%s0 + $0x20] sm:$0xff]
    %v51 = vld [vmem:[%s0 + $0x28] sm:$0xff]
    %v52 = vld [vmem:[%s0 + $0x30] sm:$0xff]
    %v53 = vld [vmem:[%s0 + $0x38] sm:$0xff]
    %v54 = vld [vmem:[%s0 + $0x40] sm:$0xff]
    %v55 = vld [vmem:[%s0 + $0x48] sm:$0xff]
    %v56 = vld [vmem:[%s0 + $0x50] sm:$0xff]
    %v57 = vld [vmem:[%s0 + $0x58] sm:$0xff]
    %v58 = vld [vmem:[%s0 + $0x60] sm:$0xff]
    %v59 = vld [vmem:[%s0 + $0x68] sm:$0xff]
    %v60 = vld [vmem:[%s0 + $0x70] sm:$0xff]
    %v61 = vld [vmem:[%s0 + $0x78] sm:$0xff]
    %v62 = vld [vmem:[%s0 + $0x80] sm:$0xff]
    %v63 = vld [vmem:[%s0 + $0x88] sm:$0xff]
    %v64 = vld [vmem:[%s0 + $0x90] sm:$0xff]
    %v65 = vld [vmem:[%s0 + $0x98] sm:$0xff]
    %v66 = vld [vmem:[%s0 + $0xa0] sm:$0xff]
    %v67 = vld [vmem:[%s0 + $0xa8] sm:$0xff]
    %v68 = vld [vmem:[%s0 + $0xb0] sm:$0xff]
    %v69 = vld [vmem:[%s0 + $0xb8] sm:$0xff]
    %v70 = vld [vmem:[%s0 + $0xc0] sm:$0xff]
    %v71 = vld [vmem:[%s0 + $0xc8] sm:$0xff]
    %v72 = vld [vmem:[%s0 + $0xd0] sm:$0xff]
    %v73 = vld [vmem:[%s0 + $0xd8] sm:$0xff]
    %v74 = vld [vmem:[%s0 + $0xe0] sm:$0xff]
    %v75 = vld [vmem:[%s0 + $0xe8] sm:$0xff]
    %v76 = vld [vmem:[%s0 + $0xf0] sm:$0xff]
    %v77 = vld [vmem:[%s0 + $0xf8] sm:$0xff]
    %v78 = vld [vmem:[%s2] sm:$0xff]
    %v79 = vld [vmem:[%s2 + $0x8] sm:$0xff]
    %v80 = vld [vmem:[%s2 + $0x10] sm:$0xff]
    %v81 = vld [vmem:[%s2 + $0x18] sm:$0xff]
    %83 = vset.pattern.permute.xlu0 0
    %84 = vperm.xlu0 %83, %v78
    %v85 = vpop.permute.xlu0 %84
    %88 = vset.pattern.permute.xlu0 0
    %89 = vperm.xlu0 %88, %v79
    %v90 = vpop.permute.xlu0 %89
    %93 = vset.pattern.permute.xlu0 0
    %94 = vperm.xlu0 %93, %v80
    %v95 = vpop.permute.xlu0 %94
    %98 = vset.pattern.permute.xlu0 0
    %99 = vperm.xlu0 %98, %v81
    %v100 = vpop.permute.xlu0 %99
    %vm102 = vcmask 130048
    %v104 = vsel %vm102, %v42, 0
    %v107 = vsel %vm102, %v43, 0
    %v110 = vsel %vm102, %v44, 0
    %v113 = vsel %vm102, %v45, 0
    %v116 = vsel %vm102, %v46, 0
    %v119 = vsel %vm102, %v47, 0
    %v122 = vsel %vm102, %v48, 0
    %v125 = vsel %vm102, %v49, 0
    %v128 = vsel %vm102, %v50, 0
    %v131 = vsel %vm102, %v51, 0
    %v134 = vsel %vm102, %v52, 0
    %v137 = vsel %vm102, %v53, 0
    %v140 = vsel %vm102, %v54, 0
    %v143 = vsel %vm102, %v55, 0
    %v146 = vsel %vm102, %v56, 0
    %v149 = vsel %vm102, %v57, 0
    %v152 = vsel %vm102, %v58, 0
    %v155 = vsel %vm102, %v59, 0
    %v158 = vsel %vm102, %v60, 0
    %v161 = vsel %vm102, %v61, 0
    %v164 = vsel %vm102, %v62, 0
    %v167 = vsel %vm102, %v63, 0
    %v170 = vsel %vm102, %v64, 0
    %v173 = vsel %vm102, %v65, 0
    %v176 = vsel %vm102, %v66, 0
    %v179 = vsel %vm102, %v67, 0
    %v182 = vsel %vm102, %v68, 0
    %v185 = vsel %vm102, %v69, 0
    %v188 = vsel %vm102, %v70, 0
    %v191 = vsel %vm102, %v71, 0
    %v194 = vsel %vm102, %v72, 0
    %v197 = vsel %vm102, %v73, 0
    %v200 = vsel %vm102, %v74, 0
    %v203 = vsel %vm102, %v75, 0
    %v206 = vsel %vm102, %v76, 0
    %v209 = vsel %vm102, %v77, 0
    %211 = vmatprep.subr.mxu0 0.0
    %212 = vmatpush1.xpose.msra.mxu0 %v161
    %213 = vmatprep.subr.mxu0 0.0
    %214 = vmatpush1.xpose.msra.mxu0 %v158
    %215 = vmatprep.subr.mxu0 0.0
    %216 = vmatpush1.xpose.msra.mxu0 %v155
    %217 = vmatprep.subr.mxu0 0.0
    %218 = vmatpush1.xpose.msra.mxu0 %v152
    %219 = vmatprep.subr.mxu0 0.0
    %220 = vmatpush1.xpose.msra.mxu0 %v149
    %221 = vmatprep.subr.mxu0 0.0
    %222 = vmatpush1.xpose.msra.mxu0 %v146
    %223 = vmatprep.subr.mxu0 0.0
    %224 = vmatpush1.xpose.msra.mxu0 %v143
    %225 = vmatprep.subr.mxu0 0.0
    %226 = vmatpush1.xpose.msra.mxu0 %v140
    %227 = vmatprep.subr.mxu0 0.0
    %228 = vmatpush1.xpose.msra.mxu0 %v137
    %229 = vmatprep.subr.mxu0 0.0
    %230 = vmatpush1.xpose.msra.mxu0 %v134
    %231 = vmatprep.subr.mxu0 0.0
    %232 = vmatpush1.xpose.msra.mxu0 %v131
    %233 = vmatprep.subr.mxu0 0.0
    %234 = vmatpush1.xpose.msra.mxu0 %v128
    %235 = vmatprep.subr.mxu0 0.0
    %236 = vmatpush1.xpose.msra.mxu0 %v125
    %237 = vmatprep.subr.mxu0 0.0
    %238 = vmatpush1.xpose.msra.mxu0 %v122
    %239 = vmatprep.subr.mxu0 0.0
    %240 = vmatpush1.xpose.msra.mxu0 %v119
    %241 = vmatprep.subr.mxu0 0.0
    %242 = vmatpush1.xpose.msra.mxu0 %v116
    %243 = vmatprep.subr.mxu0 0.0
    %244 = vmatpush2.xpose.msra.mxu0 %v209
    %245 = vmatprep.subr.mxu0 0.0
    %246 = vmatpush2.xpose.msra.mxu0 %v206
    %247 = vmatprep.subr.mxu0 0.0
    %248 = vmatpush2.xpose.msra.mxu0 %v203
    %249 = vmatprep.subr.mxu0 0.0
    %250 = vmatpush2.xpose.msra.mxu0 %v200
    %251 = vmatprep.subr.mxu0 0.0
    %252 = vmatpush2.xpose.msra.mxu0 %v197
    %253 = vmatprep.subr.mxu0 0.0
    %254 = vmatpush2.xpose.msra.mxu0 %v194
    %255 = vmatprep.subr.mxu0 0.0
    %256 = vmatpush2.xpose.msra.mxu0 %v191
    %257 = vmatprep.subr.mxu0 0.0
    %258 = vmatpush2.xpose.msra.mxu0 %v188
    %259 = vmatprep.subr.mxu0 0.0
    %260 = vmatpush2.xpose.msra.mxu0 %v185
    %261 = vmatprep.subr.mxu0 0.0
    %262 = vmatpush2.xpose.msra.mxu0 %v182
    %263 = vmatprep.subr.mxu0 0.0
    %264 = vmatpush2.xpose.msra.mxu0 %v179
    %265 = vmatprep.subr.mxu0 0.0
    %266 = vmatpush2.xpose.msra.mxu0 %v176
    %267 = vmatprep.subr.mxu0 0.0
    %268 = vmatpush2.xpose.msra.mxu0 %v173
    %269 = vmatprep.subr.mxu0 0.0
    %270 = vmatpush2.xpose.msra.mxu0 %v170
    %271 = vmatprep.subr.mxu0 0.0
    %272 = vmatpush2.xpose.msra.mxu0 %v167
    %273 = vmatprep.subr.mxu0 0.0
    %274 = vmatpush2.xpose.msra.mxu0 %v164
    %275 = vmatprep.mubr.f32.mxu0 0.0
    %276 = vmatmul.mubr.f32.gmra.mxu0 %v104
    %v277 = vpop.f32.mrf.mxu0
    %v278 = vadd.f32 %v85, %v277
    %v279 = vpop.f32.mrf.mxu0
    %v280 = vadd.f32 %v85, %v279
    %281 = vmatprep.mubr.f32.mxu0 0.0
    %282 = vmatmul.mubr.f32.gmra.mxu0 %v107
    %v283 = vpop.f32.mrf.mxu0
    %v284 = vadd.f32 %v90, %v283
    %v285 = vpop.f32.mrf.mxu0
    %v286 = vadd.f32 %v90, %v285
    %287 = vmatprep.mubr.f32.mxu0 0.0
    %288 = vmatmul.mubr.f32.gmra.mxu0 %v110
    %v289 = vpop.f32.mrf.mxu0
    %v290 = vadd.f32 %v95, %v289
    %v291 = vpop.f32.mrf.mxu0
    %v292 = vadd.f32 %v95, %v291
    %293 = vmatprep.mubr.f32.mxu0 0.0
    %294 = vmatmul.mubr.f32.gmra.mxu0 %v113
    %v295 = vpop.f32.mrf.mxu0
    %v296 = vadd.f32 %v100, %v295
    %v297 = vpop.f32.mrf.mxu0
    %v298 = vadd.f32 %v100, %v297
    %299 = vdwg.mxu0
    %v300 = vmul.f32 %v278, 0.5
    %v301 = vmul.f32 %v280, 0.5
    %v302 = vmul.f32 %v284, 0.5
    %v303 = vmul.f32 %v286, 0.5
    %v304 = vmul.f32 %v290, 0.5
    %v305 = vmul.f32 %v292, 0.5
    %v306 = vmul.f32 %v296, 0.5
    %v307 = vmul.f32 %v298, 0.5
    %v308 = vmul.f32 %v278, 0.044715
    %v309 = vmul.f32 %v280, 0.044715
    %v310 = vmul.f32 %v284, 0.044715
    %v311 = vmul.f32 %v286, 0.044715
    %v312 = vmul.f32 %v290, 0.044715
    %v313 = vmul.f32 %v292, 0.044715
    %v314 = vmul.f32 %v296, 0.044715
    %v315 = vmul.f32 %v298, 0.044715
    %v316 = vmul.f32 %v308, %v278
    %v317 = vmul.f32 %v309, %v280
    %v318 = vmul.f32 %v310, %v284
    %v319 = vmul.f32 %v311, %v286
    %v320 = vmul.f32 %v312, %v290
    %v321 = vmul.f32 %v313, %v292
    %v322 = vmul.f32 %v314, %v296
    %v323 = vmul.f32 %v315, %v298
    %v324 = vmul.f32 %v316, %v278
    %v325 = vmul.f32 %v317, %v280
    %v326 = vmul.f32 %v318, %v284
    %v327 = vmul.f32 %v319, %v286
    %v328 = vmul.f32 %v320, %v290
    %v329 = vmul.f32 %v321, %v292
    %v330 = vmul.f32 %v322, %v296
    %v331 = vmul.f32 %v323, %v298
    %v332 = vadd.f32 %v278, %v324
    %v333 = vadd.f32 %v280, %v325
    %v334 = vadd.f32 %v284, %v326
    %v335 = vadd.f32 %v286, %v327
    %v336 = vadd.f32 %v290, %v328
    %v337 = vadd.f32 %v292, %v329
    %v338 = vadd.f32 %v296, %v330
    %v339 = vadd.f32 %v298, %v331
    %v340 = vmul.f32 %v332, 0.7978846
    %v341 = vmul.f32 %v333, 0.7978846
    %v342 = vmul.f32 %v334, 0.7978846
    %v343 = vmul.f32 %v335, 0.7978846
    %v344 = vmul.f32 %v336, 0.7978846
    %v345 = vmul.f32 %v337, 0.7978846
    %v346 = vmul.f32 %v338, 0.7978846
    %v347 = vmul.f32 %v339, 0.7978846
    %v348 = vtanh.pop %v340
    %v349 = vtanh.pop %v341
    %v350 = vtanh.pop %v342
    %v351 = vtanh.pop %v343
    %v352 = vtanh.pop %v344
    %v353 = vtanh.pop %v345
    %v354 = vtanh.pop %v346
    %v355 = vtanh.pop %v347
    %v356 = vadd.f32 %v348, 1.0
    %v357 = vadd.f32 %v349, 1.0
    %v358 = vadd.f32 %v350, 1.0
    %v359 = vadd.f32 %v351, 1.0
    %v360 = vadd.f32 %v352, 1.0
    %v361 = vadd.f32 %v353, 1.0
    %v362 = vadd.f32 %v354, 1.0
    %v363 = vadd.f32 %v355, 1.0
    %v364 = vmul.f32 %v300, %v356
    %v365 = vmul.f32 %v301, %v357
    %v366 = vmul.f32 %v302, %v358
    %v367 = vmul.f32 %v303, %v359
    %v368 = vmul.f32 %v304, %v360
    %v369 = vmul.f32 %v305, %v361
    %v370 = vmul.f32 %v306, %v362
    %v371 = vmul.f32 %v307, %v363
    %v372 = vld [vmem:[%s3] sm:$0xff]
    %v373 = vld [vmem:[%s3 + $0x8] sm:$0xff]
    %v374 = vld [vmem:[%s3 + $0x10] sm:$0xff]
    %v375 = vld [vmem:[%s3 + $0x18] sm:$0xff]
    %377 = vset.pattern.permute.xlu0 0
    %378 = vperm.xlu0 %377, %v372
    %v379 = vpop.permute.xlu0 %378
    %382 = vset.pattern.permute.xlu0 0
    %383 = vperm.xlu0 %382, %v373
    %v384 = vpop.permute.xlu0 %383
    %387 = vset.pattern.permute.xlu0 0
    %388 = vperm.xlu0 %387, %v374
    %v389 = vpop.permute.xlu0 %388
    %392 = vset.pattern.permute.xlu0 0
    %393 = vperm.xlu0 %392, %v375
    %v394 = vpop.permute.xlu0 %393
    %v396 = vadd.f32 %v364, %v379
    %v397 = vadd.f32 %v365, %v379
    %v398 = vadd.f32 %v366, %v384
    %v399 = vadd.f32 %v367, %v384
    %v400 = vadd.f32 %v368, %v389
    %v401 = vadd.f32 %v369, %v389
    %v402 = vadd.f32 %v370, %v394
    %v403 = vadd.f32 %v371, %v394
    %v404 = vld [vmem:[%s4] sm:$0xff]
    %v405 = vld [vmem:[%s4 + $0x8] sm:$0xff]
    %v406 = vld [vmem:[%s4 + $0x10] sm:$0xff]
    %v407 = vld [vmem:[%s4 + $0x18] sm:$0xff]
    %v408 = vld [vmem:[%s5] sm:$0xff]
    %v409 = vld [vmem:[%s5 + $0x8] sm:$0xff]
    %v410 = vld [vmem:[%s5 + $0x10] sm:$0xff]
    %v411 = vld [vmem:[%s5 + $0x18] sm:$0xff]
    %413 = vset.pattern.permute.xlu0 0
    %414 = vperm.xlu0 %413, %v408
    %v415 = vpop.permute.xlu0 %414
    %418 = vset.pattern.permute.xlu0 0
    %419 = vperm.xlu0 %418, %v409
    %v420 = vpop.permute.xlu0 %419
    %423 = vset.pattern.permute.xlu0 0
    %424 = vperm.xlu0 %423, %v410
    %v425 = vpop.permute.xlu0 %424
    %428 = vset.pattern.permute.xlu0 0
    %429 = vperm.xlu0 %428, %v411
    %v430 = vpop.permute.xlu0 %429
    %vm432 = vcmask 261120
    %v434 = vsel %vm432, %v404, 0
    %v437 = vsel %vm432, %v405, 0
    %v440 = vsel %vm432, %v406, 0
    %v443 = vsel %vm432, %v407, 0
    %445 = vmatprep.subr.mxu0 0.0
    %446 = vmatpush1.msra.mxu0 0.0
    %447 = vmatprep.subr.mxu0 0.0
    %448 = vmatpush1.msra.mxu0 0.0
    %449 = vmatprep.subr.mxu0 0.0
    %450 = vmatpush1.msra.mxu0 0.0
    %451 = vmatprep.subr.mxu0 0.0
    %452 = vmatpush1.msra.mxu0 0.0
    %453 = vmatprep.subr.mxu0 0.0
    %454 = vmatpush1.msra.mxu0 0.0
    %455 = vmatprep.subr.mxu0 0.0
    %456 = vmatpush1.msra.mxu0 0.0
    %457 = vmatprep.subr.mxu0 0.0
    %458 = vmatpush1.msra.mxu0 0.0
    %459 = vmatprep.subr.mxu0 0.0
    %460 = vmatpush1.msra.mxu0 0.0
    %461 = vmatprep.subr.mxu0 0.0
    %462 = vmatpush1.msra.mxu0 0.0
    %463 = vmatprep.subr.mxu0 0.0
    %464 = vmatpush1.msra.mxu0 0.0
    %465 = vmatprep.subr.mxu0 0.0
    %466 = vmatpush1.msra.mxu0 0.0
    %467 = vmatprep.subr.mxu0 0.0
    %468 = vmatpush1.msra.mxu0 0.0
    %469 = vmatprep.subr.mxu0 %v403
    %470 = vmatpush1.msra.mxu0 %v402
    %471 = vmatprep.subr.mxu0 %v401
    %472 = vmatpush1.msra.mxu0 %v400
    %473 = vmatprep.subr.mxu0 %v399
    %474 = vmatpush1.msra.mxu0 %v398
    %475 = vmatprep.subr.mxu0 %v397
    %476 = vmatpush1.msra.mxu0 %v396
    %477 = vmatprep.subr.mxu0 0.0
    %478 = vmatpush2.msra.mxu0 0.0
    %479 = vmatprep.subr.mxu0 0.0
    %480 = vmatpush2.msra.mxu0 0.0
    %481 = vmatprep.subr.mxu0 0.0
    %482 = vmatpush2.msra.mxu0 0.0
    %483 = vmatprep.subr.mxu0 0.0
    %484 = vmatpush2.msra.mxu0 0.0
    %485 = vmatprep.subr.mxu0 0.0
    %486 = vmatpush2.msra.mxu0 0.0
    %487 = vmatprep.subr.mxu0 0.0
    %488 = vmatpush2.msra.mxu0 0.0
    %489 = vmatprep.subr.mxu0 0.0
    %490 = vmatpush2.msra.mxu0 0.0
    %491 = vmatprep.subr.mxu0 0.0
    %492 = vmatpush2.msra.mxu0 0.0
    %493 = vmatprep.subr.mxu0 0.0
    %494 = vmatpush2.msra.mxu0 0.0
    %495 = vmatprep.subr.mxu0 0.0
    %496 = vmatpush2.msra.mxu0 0.0
    %497 = vmatprep.subr.mxu0 0.0
    %498 = vmatpush2.msra.mxu0 0.0
    %499 = vmatprep.subr.mxu0 0.0
    %500 = vmatpush2.msra.mxu0 0.0
    %501 = vmatprep.subr.mxu0 0.0
    %502 = vmatpush2.msra.mxu0 0.0
    %503 = vmatprep.subr.mxu0 0.0
    %504 = vmatpush2.msra.mxu0 0.0
    %505 = vmatprep.subr.mxu0 0.0
    %506 = vmatpush2.msra.mxu0 0.0
    %507 = vmatprep.subr.mxu0 0.0
    %508 = vmatpush2.msra.mxu0 0.0
    %509 = vmatprep.mubr.f32.mxu0 0.0
    %510 = vmatmul.mubr.f32.gmra.mxu0 %v434
    %v511 = vpop.f32.mrf.mxu0
    %v512 = vadd.f32 %v415, %v511
    %v513 = vpop.f32.mrf.mxu0
    %v514 = vadd.f32 %v415, %v513
    %515 = vmatprep.mubr.f32.mxu0 0.0
    %516 = vmatmul.mubr.f32.gmra.mxu0 %v437
    %v517 = vpop.f32.mrf.mxu0
    %v518 = vadd.f32 %v420, %v517
    %v519 = vpop.f32.mrf.mxu0
    %v520 = vadd.f32 %v420, %v519
    %521 = vmatprep.mubr.f32.mxu0 0.0
    %522 = vmatmul.mubr.f32.gmra.mxu0 %v440
    %v523 = vpop.f32.mrf.mxu0
    %v524 = vadd.f32 %v425, %v523
    %v525 = vpop.f32.mrf.mxu0
    %v526 = vadd.f32 %v425, %v525
    %527 = vmatprep.mubr.f32.mxu0 0.0
    %528 = vmatmul.mubr.f32.gmra.mxu0 %v443
    %v529 = vpop.f32.mrf.mxu0
    %v530 = vadd.f32 %v430, %v529
    %v531 = vpop.f32.mrf.mxu0
    %v532 = vadd.f32 %v430, %v531
    %533 = vdwg.mxu0
    %v534 = vmul.f32 %v512, 0.5
    %v535 = vmul.f32 %v514, 0.5
    %v536 = vmul.f32 %v518, 0.5
    %v537 = vmul.f32 %v520, 0.5
    %v538 = vmul.f32 %v524, 0.5
    %v539 = vmul.f32 %v526, 0.5
    %v540 = vmul.f32 %v530, 0.5
    %v541 = vmul.f32 %v532, 0.5
    %v542 = vmul.f32 %v512, 0.044715
    %v543 = vmul.f32 %v514, 0.044715
    %v544 = vmul.f32 %v518, 0.044715
    %v545 = vmul.f32 %v520, 0.044715
    %v546 = vmul.f32 %v524, 0.044715
    %v547 = vmul.f32 %v526, 0.044715
    %v548 = vmul.f32 %v530, 0.044715
    %v549 = vmul.f32 %v532, 0.044715
    %v550 = vmul.f32 %v542, %v512
    %v551 = vmul.f32 %v543, %v514
    %v552 = vmul.f32 %v544, %v518
    %v553 = vmul.f32 %v545, %v520
    %v554 = vmul.f32 %v546, %v524
    %v555 = vmul.f32 %v547, %v526
    %v556 = vmul.f32 %v548, %v530
    %v557 = vmul.f32 %v549, %v532
    %v558 = vmul.f32 %v550, %v512
    %v559 = vmul.f32 %v551, %v514
    %v560 = vmul.f32 %v552, %v518
    %v561 = vmul.f32 %v553, %v520
    %v562 = vmul.f32 %v554, %v524
    %v563 = vmul.f32 %v555, %v526
    %v564 = vmul.f32 %v556, %v530
    %v565 = vmul.f32 %v557, %v532
    %v566 = vadd.f32 %v512, %v558
    %v567 = vadd.f32 %v514, %v559
    %v568 = vadd.f32 %v518, %v560
    %v569 = vadd.f32 %v520, %v561
    %v570 = vadd.f32 %v524, %v562
    %v571 = vadd.f32 %v526, %v563
    %v572 = vadd.f32 %v530, %v564
    %v573 = vadd.f32 %v532, %v565
    %v574 = vmul.f32 %v566, 0.7978846
    %v575 = vmul.f32 %v567, 0.7978846
    %v576 = vmul.f32 %v568, 0.7978846
    %v577 = vmul.f32 %v569, 0.7978846
    %v578 = vmul.f32 %v570, 0.7978846
    %v579 = vmul.f32 %v571, 0.7978846
    %v580 = vmul.f32 %v572, 0.7978846
    %v581 = vmul.f32 %v573, 0.7978846
    %v582 = vtanh.pop %v574
    %v583 = vtanh.pop %v575
    %v584 = vtanh.pop %v576
    %v585 = vtanh.pop %v577
    %v586 = vtanh.pop %v578
    %v587 = vtanh.pop %v579
    %v588 = vtanh.pop %v580
    %v589 = vtanh.pop %v581
    %v590 = vadd.f32 %v582, 1.0
    %v591 = vadd.f32 %v583, 1.0
    %v592 = vadd.f32 %v584, 1.0
    %v593 = vadd.f32 %v585, 1.0
    %v594 = vadd.f32 %v586, 1.0
    %v595 = vadd.f32 %v587, 1.0
    %v596 = vadd.f32 %v588, 1.0
    %v597 = vadd.f32 %v589, 1.0
    %v598 = vmul.f32 %v534, %v590
    %v599 = vmul.f32 %v535, %v591
    %v600 = vmul.f32 %v536, %v592
    %v601 = vmul.f32 %v537, %v593
    %v602 = vmul.f32 %v538, %v594
    %v603 = vmul.f32 %v539, %v595
    %v604 = vmul.f32 %v540, %v596
    %v605 = vmul.f32 %v541, %v597
    %v606 = vld [vmem:[%s6] sm:$0xff]
    %v607 = vld [vmem:[%s6 + $0x8] sm:$0xff]
    %v608 = vld [vmem:[%s6 + $0x10] sm:$0xff]
    %v609 = vld [vmem:[%s6 + $0x18] sm:$0xff]
    %611 = vset.pattern.permute.xlu0 0
    %612 = vperm.xlu0 %611, %v606
    %v613 = vpop.permute.xlu0 %612
    %616 = vset.pattern.permute.xlu0 0
    %617 = vperm.xlu0 %616, %v607
    %v618 = vpop.permute.xlu0 %617
    %621 = vset.pattern.permute.xlu0 0
    %622 = vperm.xlu0 %621, %v608
    %v623 = vpop.permute.xlu0 %622
    %626 = vset.pattern.permute.xlu0 0
    %627 = vperm.xlu0 %626, %v609
    %v628 = vpop.permute.xlu0 %627
    %v630 = vadd.f32 %v598, %v613
    %v631 = vadd.f32 %v599, %v613
    %v632 = vadd.f32 %v600, %v618
    %v633 = vadd.f32 %v601, %v618
    %v634 = vadd.f32 %v602, %v623
    %v635 = vadd.f32 %v603, %v623
    %v636 = vadd.f32 %v604, %v628
    %v637 = vadd.f32 %v605, %v628
    %v638 = vld [vmem:[%s7] sm:$0xff]
    %v639 = vld [vmem:[%s7 + $0x8] sm:$0xff]
    %v640 = vld [vmem:[%s7 + $0x10] sm:$0xff]
    %v641 = vld [vmem:[%s7 + $0x18] sm:$0xff]
    %v642 = vld [vmem:[%s8] sm:$0xff]
    %v643 = vld [vmem:[%s8 + $0x8] sm:$0xff]
    %v644 = vld [vmem:[%s8 + $0x10] sm:$0xff]
    %v645 = vld [vmem:[%s8 + $0x18] sm:$0xff]
    %647 = vset.pattern.permute.xlu0 0
    %648 = vperm.xlu0 %647, %v642
    %v649 = vpop.permute.xlu0 %648
    %652 = vset.pattern.permute.xlu0 0
    %653 = vperm.xlu0 %652, %v643
    %v654 = vpop.permute.xlu0 %653
    %657 = vset.pattern.permute.xlu0 0
    %658 = vperm.xlu0 %657, %v644
    %v659 = vpop.permute.xlu0 %658
    %662 = vset.pattern.permute.xlu0 0
    %663 = vperm.xlu0 %662, %v645
    %v664 = vpop.permute.xlu0 %663
    %v667 = vsel %vm432, %v638, 0
    %v670 = vsel %vm432, %v639, 0
    %v673 = vsel %vm432, %v640, 0
    %v676 = vsel %vm432, %v641, 0
    %678 = vmatprep.subr.mxu0 0.0
    %679 = vmatpush1.msra.mxu0 0.0
    %680 = vmatprep.subr.mxu0 0.0
    %681 = vmatpush1.msra.mxu0 0.0
    %682 = vmatprep.subr.mxu0 0.0
    %683 = vmatpush1.msra.mxu0 0.0
    %684 = vmatprep.subr.mxu0 0.0
    %685 = vmatpush1.msra.mxu0 0.0
    %686 = vmatprep.subr.mxu0 0.0
    %687 = vmatpush1.msra.mxu0 0.0
    %688 = vmatprep.subr.mxu0 0.0
    %689 = vmatpush1.msra.mxu0 0.0
    %690 = vmatprep.subr.mxu0 0.0
    %691 = vmatpush1.msra.mxu0 0.0
    %692 = vmatprep.subr.mxu0 0.0
    %693 = vmatpush1.msra.mxu0 0.0
    %694 = vmatprep.subr.mxu0 0.0
    %695 = vmatpush1.msra.mxu0 0.0
    %696 = vmatprep.subr.mxu0 0.0
    %697 = vmatpush1.msra.mxu0 0.0
    %698 = vmatprep.subr.mxu0 0.0
    %699 = vmatpush1.msra.mxu0 0.0
    %700 = vmatprep.subr.mxu0 0.0
    %701 = vmatpush1.msra.mxu0 0.0
    %702 = vmatprep.subr.mxu0 %v637
    %703 = vmatpush1.msra.mxu0 %v636
    %704 = vmatprep.subr.mxu0 %v635
    %705 = vmatpush1.msra.mxu0 %v634
    %706 = vmatprep.subr.mxu0 %v633
    %707 = vmatpush1.msra.mxu0 %v632
    %708 = vmatprep.subr.mxu0 %v631
    %709 = vmatpush1.msra.mxu0 %v630
    %710 = vmatprep.subr.mxu0 0.0
    %711 = vmatpush2.msra.mxu0 0.0
    %712 = vmatprep.subr.mxu0 0.0
    %713 = vmatpush2.msra.mxu0 0.0
    %714 = vmatprep.subr.mxu0 0.0
    %715 = vmatpush2.msra.mxu0 0.0
    %716 = vmatprep.subr.mxu0 0.0
    %717 = vmatpush2.msra.mxu0 0.0
    %718 = vmatprep.subr.mxu0 0.0
    %719 = vmatpush2.msra.mxu0 0.0
    %720 = vmatprep.subr.mxu0 0.0
    %721 = vmatpush2.msra.mxu0 0.0
    %722 = vmatprep.subr.mxu0 0.0
    %723 = vmatpush2.msra.mxu0 0.0
    %724 = vmatprep.subr.mxu0 0.0
    %725 = vmatpush2.msra.mxu0 0.0
    %726 = vmatprep.subr.mxu0 0.0
    %727 = vmatpush2.msra.mxu0 0.0
    %728 = vmatprep.subr.mxu0 0.0
    %729 = vmatpush2.msra.mxu0 0.0
    %730 = vmatprep.subr.mxu0 0.0
    %731 = vmatpush2.msra.mxu0 0.0
    %732 = vmatprep.subr.mxu0 0.0
    %733 = vmatpush2.msra.mxu0 0.0
    %734 = vmatprep.subr.mxu0 0.0
    %735 = vmatpush2.msra.mxu0 0.0
    %736 = vmatprep.subr.mxu0 0.0
    %737 = vmatpush2.msra.mxu0 0.0
    %738 = vmatprep.subr.mxu0 0.0
    %739 = vmatpush2.msra.mxu0 0.0
    %740 = vmatprep.subr.mxu0 0.0
    %741 = vmatpush2.msra.mxu0 0.0
    %742 = vmatprep.mubr.f32.mxu0 0.0
    %743 = vmatmul.mubr.f32.gmra.mxu0 %v667
    %v744 = vpop.f32.mrf.mxu0
    %v745 = vadd.f32 %v649, %v744
    %v746 = vpop.f32.mrf.mxu0
    %v747 = vadd.f32 %v649, %v746
    %748 = vmatprep.mubr.f32.mxu0 0.0
    %749 = vmatmul.mubr.f32.gmra.mxu0 %v670
    %v750 = vpop.f32.mrf.mxu0
    %v751 = vadd.f32 %v654, %v750
    %v752 = vpop.f32.mrf.mxu0
    %v753 = vadd.f32 %v654, %v752
    %754 = vmatprep.mubr.f32.mxu0 0.0
    %755 = vmatmul.mubr.f32.gmra.mxu0 %v673
    %v756 = vpop.f32.mrf.mxu0
    %v757 = vadd.f32 %v659, %v756
    %v758 = vpop.f32.mrf.mxu0
    %v759 = vadd.f32 %v659, %v758
    %760 = vmatprep.mubr.f32.mxu0 0.0
    %761 = vmatmul.mubr.f32.gmra.mxu0 %v676
    %v762 = vpop.f32.mrf.mxu0
    %v763 = vadd.f32 %v664, %v762
    %v764 = vpop.f32.mrf.mxu0
    %v765 = vadd.f32 %v664, %v764
    %766 = vdwg.mxu0
    %v767 = vmul.f32 %v745, 0.5
    %v768 = vmul.f32 %v747, 0.5
    %v769 = vmul.f32 %v751, 0.5
    %v770 = vmul.f32 %v753, 0.5
    %v771 = vmul.f32 %v757, 0.5
    %v772 = vmul.f32 %v759, 0.5
    %v773 = vmul.f32 %v763, 0.5
    %v774 = vmul.f32 %v765, 0.5
    %v775 = vmul.f32 %v745, 0.044715
    %v776 = vmul.f32 %v747, 0.044715
    %v777 = vmul.f32 %v751, 0.044715
    %v778 = vmul.f32 %v753, 0.044715
    %v779 = vmul.f32 %v757, 0.044715
    %v780 = vmul.f32 %v759, 0.044715
    %v781 = vmul.f32 %v763, 0.044715
    %v782 = vmul.f32 %v765, 0.044715
    %v783 = vmul.f32 %v775, %v745
    %v784 = vmul.f32 %v776, %v747
    %v785 = vmul.f32 %v777, %v751
    %v786 = vmul.f32 %v778, %v753
    %v787 = vmul.f32 %v779, %v757
    %v788 = vmul.f32 %v780, %v759
    %v789 = vmul.f32 %v781, %v763
    %v790 = vmul.f32 %v782, %v765
    %v791 = vmul.f32 %v783, %v745
    %v792 = vmul.f32 %v784, %v747
    %v793 = vmul.f32 %v785, %v751
    %v794 = vmul.f32 %v786, %v753
    %v795 = vmul.f32 %v787, %v757
    %v796 = vmul.f32 %v788, %v759
    %v797 = vmul.f32 %v789, %v763
    %v798 = vmul.f32 %v790, %v765
    %v799 = vadd.f32 %v745, %v791
    %v800 = vadd.f32 %v747, %v792
    %v801 = vadd.f32 %v751, %v793
    %v802 = vadd.f32 %v753, %v794
    %v803 = vadd.f32 %v757, %v795
    %v804 = vadd.f32 %v759, %v796
    %v805 = vadd.f32 %v763, %v797
    %v806 = vadd.f32 %v765, %v798
    %v807 = vmul.f32 %v799, 0.7978846
    %v808 = vmul.f32 %v800, 0.7978846
    %v809 = vmul.f32 %v801, 0.7978846
    %v810 = vmul.f32 %v802, 0.7978846
    %v811 = vmul.f32 %v803, 0.7978846
    %v812 = vmul.f32 %v804, 0.7978846
    %v813 = vmul.f32 %v805, 0.7978846
    %v814 = vmul.f32 %v806, 0.7978846
    %v815 = vtanh.pop %v807
    %v816 = vtanh.pop %v808
    %v817 = vtanh.pop %v809
    %v818 = vtanh.pop %v810
    %v819 = vtanh.pop %v811
    %v820 = vtanh.pop %v812
    %v821 = vtanh.pop %v813
    %v822 = vtanh.pop %v814
    %v823 = vadd.f32 %v815, 1.0
    %v824 = vadd.f32 %v816, 1.0
    %v825 = vadd.f32 %v817, 1.0
    %v826 = vadd.f32 %v818, 1.0
    %v827 = vadd.f32 %v819, 1.0
    %v828 = vadd.f32 %v820, 1.0
    %v829 = vadd.f32 %v821, 1.0
    %v830 = vadd.f32 %v822, 1.0
    %v831 = vmul.f32 %v767, %v823
    %v832 = vmul.f32 %v768, %v824
    %v833 = vmul.f32 %v769, %v825
    %v834 = vmul.f32 %v770, %v826
    %v835 = vmul.f32 %v771, %v827
    %v836 = vmul.f32 %v772, %v828
    %v837 = vmul.f32 %v773, %v829
    %v838 = vmul.f32 %v774, %v830
    %v839 = vld [vmem:[%s9] sm:$0xff]
    %v840 = vld [vmem:[%s9 + $0x8] sm:$0xff]
    %v841 = vld [vmem:[%s9 + $0x10] sm:$0xff]
    %v842 = vld [vmem:[%s9 + $0x18] sm:$0xff]
    %844 = vset.pattern.permute.xlu0 0
    %845 = vperm.xlu0 %844, %v839
    %v846 = vpop.permute.xlu0 %845
    %849 = vset.pattern.permute.xlu0 0
    %850 = vperm.xlu0 %849, %v840
    %v851 = vpop.permute.xlu0 %850
    %854 = vset.pattern.permute.xlu0 0
    %855 = vperm.xlu0 %854, %v841
    %v856 = vpop.permute.xlu0 %855
    %859 = vset.pattern.permute.xlu0 0
    %860 = vperm.xlu0 %859, %v842
    %v861 = vpop.permute.xlu0 %860
    %v863 = vadd.f32 %v831, %v846
    %v864 = vadd.f32 %v832, %v846
    %v865 = vadd.f32 %v833, %v851
    %v866 = vadd.f32 %v834, %v851
    %v867 = vadd.f32 %v835, %v856
    %v868 = vadd.f32 %v836, %v856
    %v869 = vadd.f32 %v837, %v861
    %v870 = vadd.f32 %v838, %v861
    %v871 = vld [vmem:[%s10] sm:$0xf]
    %v872 = vld [vmem:[%s11] sm:$0xf]
    %874 = vset.pattern.permute.xlu0 0
    %875 = vperm.xlu0 %874, %v872
    %v876 = vpop.permute.xlu0 %875
    %v879 = vsel %vm432, %v871, 0
    %881 = vmatprep.subr.mxu0 0.0
    %882 = vmatpush1.msra.mxu0 0.0
    %883 = vmatprep.subr.mxu0 0.0
    %884 = vmatpush1.msra.mxu0 0.0
    %885 = vmatprep.subr.mxu0 0.0
    %886 = vmatpush1.msra.mxu0 0.0
    %887 = vmatprep.subr.mxu0 0.0
    %888 = vmatpush1.msra.mxu0 0.0
    %889 = vmatprep.subr.mxu0 0.0
    %890 = vmatpush1.msra.mxu0 0.0
    %891 = vmatprep.subr.mxu0 0.0
    %892 = vmatpush1.msra.mxu0 0.0
    %893 = vmatprep.subr.mxu0 0.0
    %894 = vmatpush1.msra.mxu0 0.0
    %895 = vmatprep.subr.mxu0 0.0
    %896 = vmatpush1.msra.mxu0 0.0
    %897 = vmatprep.subr.mxu0 0.0
    %898 = vmatpush1.msra.mxu0 0.0
    %899 = vmatprep.subr.mxu0 0.0
    %900 = vmatpush1.msra.mxu0 0.0
    %901 = vmatprep.subr.mxu0 0.0
    %902 = vmatpush1.msra.mxu0 0.0
    %903 = vmatprep.subr.mxu0 0.0
    %904 = vmatpush1.msra.mxu0 0.0
    %905 = vmatprep.subr.mxu0 %v870
    %906 = vmatpush1.msra.mxu0 %v869
    %907 = vmatprep.subr.mxu0 %v868
    %908 = vmatpush1.msra.mxu0 %v867
    %909 = vmatprep.subr.mxu0 %v866
    %910 = vmatpush1.msra.mxu0 %v865
    %911 = vmatprep.subr.mxu0 %v864
    %912 = vmatpush1.msra.mxu0 %v863
    %913 = vmatprep.subr.mxu0 0.0
    %914 = vmatpush2.msra.mxu0 0.0
    %915 = vmatprep.subr.mxu0 0.0
    %916 = vmatpush2.msra.mxu0 0.0
    %917 = vmatprep.subr.mxu0 0.0
    %918 = vmatpush2.msra.mxu0 0.0
    %919 = vmatprep.subr.mxu0 0.0
    %920 = vmatpush2.msra.mxu0 0.0
    %921 = vmatprep.subr.mxu0 0.0
    %922 = vmatpush2.msra.mxu0 0.0
    %923 = vmatprep.subr.mxu0 0.0
    %924 = vmatpush2.msra.mxu0 0.0
    %925 = vmatprep.subr.mxu0 0.0
    %926 = vmatpush2.msra.mxu0 0.0
    %927 = vmatprep.subr.mxu0 0.0
    %928 = vmatpush2.msra.mxu0 0.0
    %929 = vmatprep.subr.mxu0 0.0
    %930 = vmatpush2.msra.mxu0 0.0
    %931 = vmatprep.subr.mxu0 0.0
    %932 = vmatpush2.msra.mxu0 0.0
    %933 = vmatprep.subr.mxu0 0.0
    %934 = vmatpush2.msra.mxu0 0.0
    %935 = vmatprep.subr.mxu0 0.0
    %936 = vmatpush2.msra.mxu0 0.0
    %937 = vmatprep.subr.mxu0 0.0
    %938 = vmatpush2.msra.mxu0 0.0
    %939 = vmatprep.subr.mxu0 0.0
    %940 = vmatpush2.msra.mxu0 0.0
    %941 = vmatprep.subr.mxu0 0.0
    %942 = vmatpush2.msra.mxu0 0.0
    %943 = vmatprep.subr.mxu0 0.0
    %944 = vmatpush2.msra.mxu0 0.0
    %945 = vmatprep.mubr.f32.mxu0 0.0
    %946 = vmatmul.mubr.f32.gmra.mxu0 %v879
    %v947 = vpop.f32.mrf.mxu0
    %v948 = vadd.f32 %v876, %v947
    %v949 = vpop.f32.mrf.mxu0
    %v950 = vadd.f32 %v876, %v949
    %951 = vdwg.mxu0
    %v952 = vmax.f32 %v948, -1.0
    %v953 = vmax.f32 %v950, -1.0
    %v954 = vmin.f32 %v952, 1.0
    %v955 = vmin.f32 %v953, 1.0
    %v958 = vcombine.low %v954, %v955
    %960 = vst [vmem:[#allocation2] sm:$0xff] %v958
    // Predicated region
    $region50: #{tpu_custom_call.1} parent=1 // pred_check
      _
    $region51: #{tpu_custom_call.1} parent=1 // pred_check_branch
      %962 = sbr.rel (0) target = $region53
    $region52: #{tpu_custom_call.1} parent=1 // pred_region
      %s964 = ssub.s32 128, 128
      %965 = vsyncadd [#allocation3], %s964
      %s967 = sshll.u32 [#allocation2], 4
      %s968 = int_to_ptr.vmem [resolvable:$true] %s967
      %970 = dma.vmem_to_hbm [thread:$0]  %s968, 128, %s12, [#allocation3]
    $region53: #{tpu_custom_call.1} parent=1 // pred_fallthru
      _
    // Predicated region
    $region54: #{tpu_custom_call.1} parent=1 // pred_check
      _
    $region55: #{tpu_custom_call.1} parent=1 // pred_check_branch
      %972 = sbr.rel (0) target = $region57
    $region56: #{tpu_custom_call.1} parent=1 // pred_region
      %973 = dma.done [#allocation3], 128
    $region57: #{tpu_custom_call.1} parent=1 // pred_fallthru
      _
    %974 = vsyncpa [#allocation3], 1

</llo_original>
